<compile_context>
chip_gen: v7x
topology: tpu7x:2x2x1
jax: 0.10.0
libtpu: 0.0.40
codegen_flags: <defaults>
</compile_context>

<pallas_src>
import functools
import math
from typing import Sequence, Union

import jax
import jax.numpy as jnp
from jax.experimental import pallas as pl
from jax.experimental.pallas import tpu as pltpu


def _mask_kernel(pos_ref, len_ref, fill_ref, coord_ref, spec_ref, out_ref, *,
                 dim: int, n_masks: int, rows_per_block: int):
    """One grid step = one lane-dense (b_blk, l_tile) slab of the flattened (B, T*F) spec.

    pos_ref / len_ref : VMEM (b_blk, n_masks) int32 — mask starts / widths along `dim`
    fill_ref          : SMEM (1,) float32           — value written into masked entries
    coord_ref         : VMEM (1, l_tile) int32      — per-column coordinate pattern along the
                                                      masked axis; identical for every L-block
                                                      because l_tile % F == 0.
    """
    coord = coord_ref[...]                                     # (1, l_tile) int32
    if dim == 1:
        # global time index of column c in L-block lj is lj*(l_tile//F) + coord[c]
        coord = coord + pl.program_id(1) * rows_per_block

    pos = pos_ref[...]                                         # (b_blk, M) int32
    lens = len_ref[...]

    hit = None
    for m in range(n_masks):                                   # static, tiny (num_mask*lfr_rate)
        p = pos[:, m:m + 1]                                    # (b_blk, 1)
        w = lens[:, m:m + 1]
        # unsigned trick: coord - p in [0, w)  <=>  uint32(coord - p) < uint32(w)
        d = (coord - p).astype(jnp.uint32)                     # (b_blk, l_tile)
        h = d < w.astype(jnp.uint32)
        hit = h if hit is None else (hit | h)

    fill = fill_ref[0].astype(out_ref.dtype)
    out_ref[...] = jnp.where(hit, fill, spec_ref[...])


def _choose_block(B: int, L: int, F: int, itemsize: int, target_bytes: int):
    """Pick a lane-dense (b_blk, l_tile) block for the flattened (B, L=T*F) spec.

    Legality: b_blk is a multiple of 8 or == B; l_tile is a multiple of lcm(F, 128)
    (lane-dense AND keeps the coordinate pattern block-invariant) or == L.
    """
    lane_unit = (F * 128) // math.gcd(F, 128)
    row_bytes = L * itemsize
    min_b = B if B < 8 else 8

    if min_b * row_bytes <= target_bytes:
        # Rows are small: widen across batch, keep full rows so DMAs stay large.
        l_tile = L
        if B < 8:
            b_blk = B
        else:
            cand = max(8, (target_bytes // max(row_bytes, 1)) // 8 * 8)
            b_blk = B if cand >= B else cand
    else:
        b_blk = min_b
        per_row = max(1, target_bytes // (b_blk * itemsize))
        l_tile = max(lane_unit, (per_row // lane_unit) * lane_unit)
        if l_tile >= L:
            l_tile = L
    return int(b_blk), int(l_tile)


def apply_mask_pallas(spec, mask_pos, mask_length, fill_value, dim: int,
                      target_block_bytes=None):
    """spec: (B, T, F); mask_pos / mask_length: (B, M) int32; fill_value: (1,) float32."""
    B, T, F = spec.shape
    M = mask_pos.shape[1]
    if M == 0:
        return spec
    L = T * F
    itemsize = spec.dtype.itemsize

    # Generation-aware VMEM budget (v5e/v6e 128 MiB physical, v7x 64 MiB).
    try:
        vmem_cap = int(pltpu.get_tpu_info().vmem_capacity_bytes)
    except Exception:
        vmem_cap = 64 << 20                                   # conservative: v7x physical VMEM
    vmem_budget = (vmem_cap * 3) // 4
    if target_block_bytes is None:
        # ~4 MiB blocks keep the ~0.35 us/step overhead ~10% of the HBM stream on v7x while
        # the 4 double-buffers + Mosaic elementwise temporaries still fit every generation.
        target_block_bytes = int(min(4 << 20, vmem_budget // 12))

    b_blk, l_tile = _choose_block(B, L, F, itemsize, target_block_bytes)
    rows_per_block = l_tile // F                               # l_tile % F == 0 by construction

    # Per-column coordinate along the masked axis; block-invariant, fetched once.
    cols = jnp.arange(l_tile, dtype=jnp.int32)
    coord = (cols // F if dim == 1 else cols % F).reshape(1, l_tile)

    spec2 = spec.reshape(B, L)                                 # free row-major view
    n_b = pl.cdiv(B, b_blk)
    n_l = pl.cdiv(L, l_tile)

    kernel = functools.partial(_mask_kernel, dim=dim, n_masks=M,
                               rows_per_block=rows_per_block)

    cost = pl.CostEstimate(
        flops=int((3 * M + 1) * B * L),
        transcendentals=0,
        bytes_accessed=int(2 * B * L * itemsize + l_tile * 4 + 2 * B * M * 4 + 4),
    )

    out = pl.pallas_call(
        kernel,
        out_shape=jax.ShapeDtypeStruct((B, L), spec.dtype),
        grid=(n_b, n_l),
        in_specs=[
            pl.BlockSpec((b_blk, M), lambda bi, lj: (bi, 0)),                 # mask_pos
            pl.BlockSpec((b_blk, M), lambda bi, lj: (bi, 0)),                 # mask_length
            pl.BlockSpec(memory_space=pltpu.MemorySpace.SMEM),                # fill value
            pl.BlockSpec((1, l_tile), lambda bi, lj: (0, 0)),                 # coord pattern
            pl.BlockSpec((b_blk, l_tile), lambda bi, lj: (bi, lj)),           # spec
        ],
        out_specs=pl.BlockSpec((b_blk, l_tile), lambda bi, lj: (bi, lj)),
        compiler_params=pltpu.CompilerParams(
            dimension_semantics=("parallel", "parallel"),
            vmem_limit_bytes=int(vmem_budget)),
        cost_estimate=cost,
    )(
        mask_pos.astype(jnp.int32),
        mask_length.astype(jnp.int32),
        fill_value.astype(jnp.float32),
        coord,
        spec2,
    )
    return out.reshape(B, T, F)


def mask_along_axis_lfr(
    spec,
    spec_lengths=None,
    *,
    key,
    mask_width_range: Sequence[int] = (0, 30),
    dim: int = 1,
    num_mask: int = 2,
    replace_with_zero: bool = True,
    lfr_rate: int = 1,
    target_block_bytes=None,
):
    """JAX/Pallas port of mask_along_axis_lfr. Returns (masked_spec, spec_lengths, debug)."""
    org_shape = spec.shape
    if spec.ndim == 4:
        spec = spec.reshape(-1, org_shape[2], org_shape[3])
    B = spec.shape[0]
    D = spec.shape[dim] // lfr_rate

    k_len, k_pos = jax.random.split(key)
    mask_length = jax.random.randint(
        k_len, (B, num_mask), mask_width_range[0], mask_width_range[1], dtype=jnp.int32
    )
    # torch: mask_pos ~ U[0, max(1, D - mask_length.max())).  The data-dependent bound stays a
    # traced scalar (no device->host sync), so this matches the reference distribution and is
    # still jittable.
    high = jnp.maximum(1, D - jnp.max(mask_length))
    mask_pos = jax.random.randint(k_pos, (B, num_mask), 0, high, dtype=jnp.int32)

    if lfr_rate > 1:
        mask_length_full = jnp.tile(mask_length, (1, lfr_rate))
        mask_pos_full = jnp.concatenate([mask_pos + D * i for i in range(lfr_rate)], axis=1)
    else:
        mask_length_full = mask_length
        mask_pos_full = mask_pos

    if replace_with_zero:
        fill_value = jnp.zeros((1,), jnp.float32)
    else:
        # TODO(synk): second full HBM pass; fuse into a reduction+mask kernel if ever hot.
        fill_value = jnp.mean(spec).astype(jnp.float32).reshape(1)

    out = apply_mask_pallas(spec, mask_pos_full, mask_length_full, fill_value, dim,
                            target_block_bytes=target_block_bytes)
    out = out.reshape(org_shape)
    return out, spec_lengths, (mask_pos_full, mask_length_full, fill_value)


class MaskAlongAxisLFR:
    """Mirror of the PyTorch module's config handling (forward only)."""

    def __init__(
        self,
        mask_width_range: Union[int, Sequence[int]] = (0, 30),
        num_mask: int = 2,
        dim: Union[int, str] = "time",
        replace_with_zero: bool = True,
        lfr_rate: int = 1,
    ):
        if isinstance(mask_width_range, int):
            mask_width_range = (0, mask_width_range)
        assert len(mask_width_range) == 2 and mask_width_range[1] > mask_width_range[0]
        if isinstance(dim, str):
            if dim == "time":
                dim = 1
                lfr_rate = 1
            elif dim == "freq":
                dim = 2
            else:
                raise ValueError("dim must be int, 'time' or 'freq'")
        if dim == 1:
            lfr_rate = 1
        self.mask_width_range = tuple(mask_width_range)
        self.num_mask = num_mask
        self.dim = dim
        self.replace_with_zero = replace_with_zero
        self.lfr_rate = lfr_rate

    def __call__(self, spec, spec_lengths=None, *, key):
        out, lengths, _ = mask_along_axis_lfr(
            spec,
            spec_lengths,
            key=key,
            mask_width_range=self.mask_width_range,
            dim=self.dim,
            num_mask=self.num_mask,
            replace_with_zero=self.replace_with_zero,
            lfr_rate=self.lfr_rate,
        )
        return out, lengths


def _reference_mask(spec, mask_pos, mask_length, fill_value, dim):
    """Pure-JAX reference with identical mask parameters (for verification)."""
    D = spec.shape[dim]
    aran = jnp.arange(D)[None, None, :]
    pos = mask_pos[:, :, None]
    length = mask_length[:, :, None]
    mask = jnp.any((pos <= aran) & (aran < pos + length), axis=1)  # (B, D)
    if dim == 1:
        mask = mask[:, :, None]
    else:
        mask = mask[:, None, :]
    return jnp.where(mask, fill_value[0].astype(spec.dtype), spec)


if __name__ == "__main__":
    key = jax.random.PRNGKey(0)
    k_data, k_mask, k_mask2, k_mask3 = jax.random.split(key, 4)

    # 1) time masking, small (Batch, Length/Time, Freq), zero fill
    B, T, F = 2, 64, 32
    spec = jax.random.normal(k_data, (B, T, F), dtype=jnp.float32)
    spec_lengths = jnp.full((B,), T, dtype=jnp.int32)

    out, _, (pos, lens, fill) = mask_along_axis_lfr(
        spec, spec_lengths, key=k_mask, mask_width_range=(0, 30), dim=1, num_mask=2)
    out = jax.block_until_ready(out)
    ref = _reference_mask(spec, pos, lens, fill, dim=1)
    assert out.shape == spec.shape and out.dtype == spec.dtype
    assert jnp.allclose(out, ref), "time-mask output does not match reference"

    # 2) freq masking + LFR, mean fill
    out_f, _, (pos_f, lens_f, fill_f) = mask_along_axis_lfr(
        spec, spec_lengths, key=k_mask, mask_width_range=(0, 8), dim=2, num_mask=2,
        replace_with_zero=False, lfr_rate=2)
    out_f = jax.block_until_ready(out_f)
    ref_f = _reference_mask(spec, pos_f, lens_f, fill_f, dim=2)
    assert jnp.allclose(out_f, ref_f), "freq/LFR output does not match reference"

    # 3) 4D path (Batch, Channel, T, F)
    spec4 = jax.random.normal(k_data, (2, 2, 40, 32), dtype=jnp.float32)
    out4, _, (pos4, lens4, fill4) = mask_along_axis_lfr(
        spec4, None, key=k_mask, mask_width_range=(0, 30), dim=1, num_mask=2)
    out4 = jax.block_until_ready(out4)
    ref4 = _reference_mask(spec4.reshape(-1, 40, 32), pos4, lens4, fill4, dim=1)
    assert out4.shape == spec4.shape
    assert jnp.allclose(out4.reshape(-1, 40, 32), ref4), "4D output does not match"

    # 4) forced L-tiling stress: mel-like F=80, non-multiple B and T (partial blocks)
    spec_big = jax.random.normal(k_data, (10, 97, 80), dtype=jnp.float32)
    out_b, _, (pos_b, lens_b, fill_b) = mask_along_axis_lfr(
        spec_big, None, key=k_mask2, mask_width_range=(0, 20), dim=1, num_mask=2,
        target_block_bytes=1 << 16)
    out_b = jax.block_until_ready(out_b)
    ref_b = _reference_mask(spec_big, pos_b, lens_b, fill_b, dim=1)
    assert jnp.allclose(out_b, ref_b), "tiled time-mask output does not match"

    # 5) freq masking on F=80 (lane-dense flatten for a non-multiple-of-128 mel dim)
    spec_mel = jax.random.normal(k_data, (3, 56, 80), dtype=jnp.float32)
    out_m, _, (pos_m, lens_m, fill_m) = mask_along_axis_lfr(
        spec_mel, None, key=k_mask3, mask_width_range=(0, 10), dim=2, num_mask=2)
    out_m = jax.block_until_ready(out_m)
    ref_m = _reference_mask(spec_mel, pos_m, lens_m, fill_m, dim=2)
    assert jnp.allclose(out_m, ref_m), "F=80 freq-mask output does not match"

    # module-level smoke run (torch-like (spec, lengths) return)
    module = MaskAlongAxisLFR(mask_width_range=(0, 30), num_mask=2, dim="time")
    out_mod, lengths_mod = module(spec, spec_lengths, key=k_mask)
    out_mod = jax.block_until_ready(out_mod)
    assert out_mod.shape == spec.shape

    print("KERNEL_OK")
</pallas_src>

<mosaic_0001>
module attributes {stable_mosaic.version = 11 : i64} {
  func.func @_mask_kernel(%arg0: i32, %arg1: i32, %arg2: memref<2x2xi32, #tpu.memory_space<vmem>>, %arg3: memref<2x2xi32, #tpu.memory_space<vmem>>, %arg4: memref<1xf32, #tpu.memory_space<smem>>, %arg5: memref<1x2048xi32, #tpu.memory_space<vmem>>, %arg6: memref<2x2048xf32, #tpu.memory_space<vmem>>, %arg7: memref<2x2048xf32, #tpu.memory_space<vmem>>) attributes {dimension_semantics = [#tpu.dimension_semantics<parallel>, #tpu.dimension_semantics<parallel>], iteration_bounds = array<i64: 1, 1>, scalar_prefetch = 0 : i64, scratch_operands = 0 : i64, tpu.core_type = #tpu.core_type<tc>, window_params = [{transform_indices = @transform_0, window_bounds = array<i64: 2, 2>}, {transform_indices = @transform_1, window_bounds = array<i64: 2, 2>}, {transform_indices = @transform_2, window_bounds = array<i64: 1>}, {pipeline_mode = #tpu.pipeline_mode<synchronous>, transform_indices = @transform_3, window_bounds = array<i64: 1, 2048>}, {transform_indices = @transform_4, window_bounds = array<i64: 2, 2048>}, {transform_indices = @transform_5, window_bounds = array<i64: 2, 2048>}]} {
    %c0 = arith.constant 0 : index
    %c0_0 = arith.constant 0 : index
    %0 = vector.load %arg5[%c0, %c0_0] : memref<1x2048xi32, #tpu.memory_space<vmem>>, vector<1x2048xi32>
    %c64_i32 = arith.constant 64 : i32
    %1 = arith.muli %arg1, %c64_i32 : i32
    %2 = vector.broadcast %1 : i32 to vector<1x2048xi32>
    %3 = arith.addi %0, %2 : vector<1x2048xi32>
    %c0_1 = arith.constant 0 : index
    %c0_2 = arith.constant 0 : index
    %4 = vector.load %arg2[%c0_1, %c0_2] : memref<2x2xi32, #tpu.memory_space<vmem>>, vector<2x2xi32>
    %c0_3 = arith.constant 0 : index
    %c0_4 = arith.constant 0 : index
    %5 = vector.load %arg3[%c0_3, %c0_4] : memref<2x2xi32, #tpu.memory_space<vmem>>, vector<2x2xi32>
    %6 = vector.extract_strided_slice %4 {offsets = [0, 0], sizes = [2, 1], strides = [1, 1]} : vector<2x2xi32> to vector<2x1xi32>
    %7 = vector.extract_strided_slice %5 {offsets = [0, 0], sizes = [2, 1], strides = [1, 1]} : vector<2x2xi32> to vector<2x1xi32>
    %8 = vector.broadcast %3 : vector<1x2048xi32> to vector<2x2048xi32>
    %9 = vector.broadcast %6 : vector<2x1xi32> to vector<2x2048xi32>
    %10 = arith.subi %8, %9 : vector<2x2048xi32>
    %11 = vector.broadcast %7 : vector<2x1xi32> to vector<2x2048xi32>
    %12 = arith.cmpi ult, %10, %11 : vector<2x2048xi32>
    %13 = vector.extract_strided_slice %4 {offsets = [0, 1], sizes = [2, 1], strides = [1, 1]} : vector<2x2xi32> to vector<2x1xi32>
    %14 = vector.extract_strided_slice %5 {offsets = [0, 1], sizes = [2, 1], strides = [1, 1]} : vector<2x2xi32> to vector<2x1xi32>
    %15 = vector.broadcast %3 : vector<1x2048xi32> to vector<2x2048xi32>
    %16 = vector.broadcast %13 : vector<2x1xi32> to vector<2x2048xi32>
    %17 = arith.subi %15, %16 : vector<2x2048xi32>
    %18 = vector.broadcast %14 : vector<2x1xi32> to vector<2x2048xi32>
    %19 = arith.cmpi ult, %17, %18 : vector<2x2048xi32>
    %20 = arith.ori %12, %19 : vector<2x2048xi1>
    %c0_5 = arith.constant 0 : index
    %21 = memref.load %arg4[%c0_5] : memref<1xf32, #tpu.memory_space<smem>>
    %c0_6 = arith.constant 0 : index
    %c0_7 = arith.constant 0 : index
    %22 = vector.load %arg6[%c0_6, %c0_7] : memref<2x2048xf32, #tpu.memory_space<vmem>>, vector<2x2048xf32>
    %23 = vector.broadcast %21 : f32 to vector<2x2048xf32>
    %24 = arith.select %20, %23, %22 : vector<2x2048xi1>, vector<2x2048xf32>
    %c0_8 = arith.constant 0 : index
    %c0_9 = arith.constant 0 : index
    %25 = vector.load %arg7[%c0_8, %c0_9] : memref<2x2048xf32, #tpu.memory_space<vmem>>, vector<2x2048xf32>
    tpu.vector_store %arg7[%c0_8, %c0_9], %24 {strides = array<i32>} : memref<2x2048xf32, #tpu.memory_space<vmem>>, vector<2x2048xf32>,
    return
  }
  func.func @transform_0(%arg0: i32, %arg1: i32) -> (i32, i32) {
    %c0_i32 = arith.constant 0 : i32
    %c0_i32_0 = arith.constant 0 : i32
    return %arg0, %c0_i32 : i32, i32
  }
  func.func @transform_1(%arg0: i32, %arg1: i32) -> (i32, i32) {
    %c0_i32 = arith.constant 0 : i32
    %c0_i32_0 = arith.constant 0 : i32
    return %arg0, %c0_i32 : i32, i32
  }
  func.func @transform_2(%arg0: i32, %arg1: i32) -> i32 {
    %c0_i32 = arith.constant 0 : i32
    %c0_i32_0 = arith.constant 0 : i32
    return %c0_i32 : i32
  }
  func.func @transform_3(%arg0: i32, %arg1: i32) -> (i32, i32) {
    %c0_i32 = arith.constant 0 : i32
    %c0_i32_0 = arith.constant 0 : i32
    %c0_i32_1 = arith.constant 0 : i32
    return %c0_i32, %c0_i32_0 : i32, i32
  }
  func.func @transform_4(%arg0: i32, %arg1: i32) -> (i32, i32) {
    %c0_i32 = arith.constant 0 : i32
    return %arg0, %arg1 : i32, i32
  }
  func.func @transform_5(%arg0: i32, %arg1: i32) -> (i32, i32) {
    %c0_i32 = arith.constant 0 : i32
    return %arg0, %arg1 : i32, i32
  }
}

</mosaic_0001>

<llo_original>
// kernel: tpu_custom_call.1
$region0: #{tpu_custom_call.1}
  #allocation0 [shape = 'u32[]', space=smem, size = 0x4, offset = 0x4, fixed_abs, tag = 'smem constant byte address 0x4 - core index']
  #allocation1 [shape = 'u32[144,128]{1,0:T(1,128)}', space=vmem, size = 0x12000, scoped, tag = 'internal scratch']
  #allocation2 [shape = 'f32[1]{0:T(128)S(6)}', space=smem, size = 0x200, scoped, tag = 'scoped memory for tpu_custom_call.1']
  %s0 = inlined_call_operand.vmem [shape: s32[2,2], index: 0, kind: input, shape index: {}]
  %s1 = inlined_call_operand.vmem [shape: s32[2,2], index: 1, kind: input, shape index: {}]
  %s2 = inlined_call_operand.<no memory space> [shape: f32[1], index: 2, kind: input, shape index: {}]
  %s3 = inlined_call_operand.hbm [shape: s32[1,2048], index: 3, kind: input, shape index: {}]
  %s4 = inlined_call_operand.hbm [shape: f32[2,2048], index: 4, kind: input, shape index: {}]
  %s5 = inlined_call_operand.hbm [shape: f32[2,2048], index: 5, kind: output, shape index: {}]
  %s6 = sld [smem:[#allocation0]]
  $region38: #{tpu_custom_call.1} parent=0
    _
  %s8 = ssub.s32 1, %s6
  %s9 = scalar_select 0, %s8, %s6
  %10 = sst [smem:[#allocation2]] %s2
  $region1: #{tpu_custom_call.1} parent=0
    #allocation3 [shape = 'u8[8192]{0}', space=vmem, size = 0x2000, scoped, tag = 'input window, operand 3, single buffered']
    #allocation4 [shape = 's32[1]{0}', space=sflag, size = 0x4, scoped, tag = 'scoped memory for tpu_custom_call.1']
    #allocation5 [shape = 's32[1]{0}', space=sflag, size = 0x4, scoped, tag = 'scoped memory for tpu_custom_call.1']
    #allocation6 [shape = 'u8[16384]{0}', space=vmem, size = 0x4000, scoped, tag = 'input window, operand 4, single buffered']
    #allocation7 [shape = 's32[1]{0}', space=sflag, size = 0x4, scoped, tag = 'scoped memory for tpu_custom_call.1']
    #allocation8 [shape = 'u8[16384]{0}', space=vmem, size = 0x4000, scoped, tag = 'output window, operand 0, single buffered']
    %11 = vsyncpa [#allocation4], 0
    %12 = vsyncpa [#allocation7], 0
    %13 = vsyncpa [#allocation5], 0
    // Predicated region
    $region2: #{tpu_custom_call.1} parent=1 // pred_check
      _
    $region3: #{tpu_custom_call.1} parent=1 // pred_check_branch
      %15 = sbr.rel (0) target = $region5
    $region4: #{tpu_custom_call.1} parent=1 // pred_region
      _
    $region5: #{tpu_custom_call.1} parent=1 // pred_fallthru
      _
    // Predicated region
    $region6: #{tpu_custom_call.1} parent=1 // pred_check
      _
    $region7: #{tpu_custom_call.1} parent=1 // pred_check_branch
      %17 = sbr.rel (0) target = $region9
    $region8: #{tpu_custom_call.1} parent=1 // pred_region
      _
    $region9: #{tpu_custom_call.1} parent=1 // pred_fallthru
      _
    // Predicated region
    $region10: #{tpu_custom_call.1} parent=1 // pred_check
      _
    $region11: #{tpu_custom_call.1} parent=1 // pred_check_branch
      %19 = sbr.rel (0) target = $region13
    $region12: #{tpu_custom_call.1} parent=1 // pred_region
      _
    $region13: #{tpu_custom_call.1} parent=1 // pred_fallthru
      _
    // Predicated region
    $region14: #{tpu_custom_call.1} parent=1 // pred_check
      _
    $region15: #{tpu_custom_call.1} parent=1 // pred_check_branch
      %21 = sbr.rel (0) target = $region17
    $region16: #{tpu_custom_call.1} parent=1 // pred_region
      %s23 = ssub.s32 256, 256
      %24 = vsyncadd [#allocation4], %s23
      %s26 = sshll.u32 [#allocation3], 4
      %s27 = int_to_ptr.vmem [resolvable:$true] %s26
      %29 = dma.hbm_to_vmem [thread:$0]  %s3, 256, %s27, [#allocation4]
    $region17: #{tpu_custom_call.1} parent=1 // pred_fallthru
      _
    // Predicated region
    $region18: #{tpu_custom_call.1} parent=1 // pred_check
      _
    $region19: #{tpu_custom_call.1} parent=1 // pred_check_branch
      %31 = sbr.rel (0) target = $region21
    $region20: #{tpu_custom_call.1} parent=1 // pred_region
      %s33 = ssub.s32 512, 512
      %34 = vsyncadd [#allocation7], %s33
      %s36 = sshll.u32 [#allocation6], 4
      %s37 = int_to_ptr.vmem [resolvable:$true] %s36
      %39 = dma.hbm_to_vmem [thread:$0]  %s4, 512, %s37, [#allocation7]
    $region21: #{tpu_custom_call.1} parent=1 // pred_fallthru
      _
    // Predicated region
    $region22: #{tpu_custom_call.1} parent=1 // pred_check
      _
    $region23: #{tpu_custom_call.1} parent=1 // pred_check_branch
      %41 = sbr.rel (0) target = $region25
    $region24: #{tpu_custom_call.1} parent=1 // pred_region
      %42 = dma.done [#allocation4], 256
    $region25: #{tpu_custom_call.1} parent=1 // pred_fallthru
      _
    // Predicated region
    $region26: #{tpu_custom_call.1} parent=1 // pred_check
      _
    $region27: #{tpu_custom_call.1} parent=1 // pred_check_branch
      %44 = sbr.rel (0) target = $region29
    $region28: #{tpu_custom_call.1} parent=1 // pred_region
      %45 = dma.done [#allocation7], 512
    $region29: #{tpu_custom_call.1} parent=1 // pred_fallthru
      _
    %v46 = vld [vmem:[#allocation3] sm:$0xff]
    %v47 = vld [vmem:[#allocation3 + $0x8] sm:$0xff]
    %s48 = smul.u32 0, 64
    %v49 = vstv %s48
    %v50 = vadd.s32 %v46, %v49
    %v51 = vadd.s32 %v47, %v49
    %v52 = vld [vmem:[%s0] sm:$0x3]
    %v53 = vld [vmem:[%s1] sm:$0x3]
    %v54 = vlaneseq
    %v55 = vshrl.u32 %v54, 7
    %v56 = vsub.s32 0, %v55
    %v57 = vrot.slane %v50, %v56
    %v58 = vlaneseq
    %v59 = vshrl.u32 %v58, 7
    %v60 = vsub.s32 1, %v59
    %v61 = vrot.slane %v50, %v60
    %v62 = vlaneseq
    %v63 = vshrl.u32 %v62, 7
    %v64 = vsub.s32 2, %v63
    %v65 = vrot.slane %v50, %v64
    %v66 = vlaneseq
    %v67 = vshrl.u32 %v66, 7
    %v68 = vsub.s32 3, %v67
    %v69 = vrot.slane %v50, %v68
    %v70 = vlaneseq
    %v71 = vshrl.u32 %v70, 7
    %v72 = vsub.s32 4, %v71
    %v73 = vrot.slane %v50, %v72
    %v74 = vlaneseq
    %v75 = vshrl.u32 %v74, 7
    %v76 = vsub.s32 5, %v75
    %v77 = vrot.slane %v50, %v76
    %v78 = vlaneseq
    %v79 = vshrl.u32 %v78, 7
    %v80 = vsub.s32 6, %v79
    %v81 = vrot.slane %v50, %v80
    %v82 = vlaneseq
    %v83 = vshrl.u32 %v82, 7
    %v84 = vsub.s32 7, %v83
    %v85 = vrot.slane %v50, %v84
    %v86 = vlaneseq
    %v87 = vshrl.u32 %v86, 7
    %v88 = vsub.s32 0, %v87
    %v89 = vrot.slane %v51, %v88
    %v90 = vlaneseq
    %v91 = vshrl.u32 %v90, 7
    %v92 = vsub.s32 1, %v91
    %v93 = vrot.slane %v51, %v92
    %v94 = vlaneseq
    %v95 = vshrl.u32 %v94, 7
    %v96 = vsub.s32 2, %v95
    %v97 = vrot.slane %v51, %v96
    %v98 = vlaneseq
    %v99 = vshrl.u32 %v98, 7
    %v100 = vsub.s32 3, %v99
    %v101 = vrot.slane %v51, %v100
    %v102 = vlaneseq
    %v103 = vshrl.u32 %v102, 7
    %v104 = vsub.s32 4, %v103
    %v105 = vrot.slane %v51, %v104
    %v106 = vlaneseq
    %v107 = vshrl.u32 %v106, 7
    %v108 = vsub.s32 5, %v107
    %v109 = vrot.slane %v51, %v108
    %v110 = vlaneseq
    %v111 = vshrl.u32 %v110, 7
    %v112 = vsub.s32 6, %v111
    %v113 = vrot.slane %v51, %v112
    %v114 = vlaneseq
    %v115 = vshrl.u32 %v114, 7
    %v116 = vsub.s32 7, %v115
    %v117 = vrot.slane %v51, %v116
    %118 = vset.pattern.permute.xlu0 0
    %119 = vperm.xlu0 %118, %v52
    %v120 = vpop.permute.xlu0 %119
    %v121 = vsub.s32 %v57, %v120
    %v122 = vsub.s32 %v61, %v120
    %v123 = vsub.s32 %v65, %v120
    %v124 = vsub.s32 %v69, %v120
    %v125 = vsub.s32 %v73, %v120
    %v126 = vsub.s32 %v77, %v120
    %v127 = vsub.s32 %v81, %v120
    %v128 = vsub.s32 %v85, %v120
    %v129 = vsub.s32 %v89, %v120
    %v130 = vsub.s32 %v93, %v120
    %v131 = vsub.s32 %v97, %v120
    %v132 = vsub.s32 %v101, %v120
    %v133 = vsub.s32 %v105, %v120
    %v134 = vsub.s32 %v109, %v120
    %v135 = vsub.s32 %v113, %v120
    %v136 = vsub.s32 %v117, %v120
    %137 = vset.pattern.permute.xlu0 0
    %138 = vperm.xlu0 %137, %v53
    %v139 = vpop.permute.xlu0 %138
    %vm140 = vcmp.lt.u32.totalorder %v121, %v139
    %vm141 = vcmp.lt.u32.totalorder %v122, %v139
    %vm142 = vcmp.lt.u32.totalorder %v123, %v139
    %vm143 = vcmp.lt.u32.totalorder %v124, %v139
    %vm144 = vcmp.lt.u32.totalorder %v125, %v139
    %vm145 = vcmp.lt.u32.totalorder %v126, %v139
    %vm146 = vcmp.lt.u32.totalorder %v127, %v139
    %vm147 = vcmp.lt.u32.totalorder %v128, %v139
    %vm148 = vcmp.lt.u32.totalorder %v129, %v139
    %vm149 = vcmp.lt.u32.totalorder %v130, %v139
    %vm150 = vcmp.lt.u32.totalorder %v131, %v139
    %vm151 = vcmp.lt.u32.totalorder %v132, %v139
    %vm152 = vcmp.lt.u32.totalorder %v133, %v139
    %vm153 = vcmp.lt.u32.totalorder %v134, %v139
    %vm154 = vcmp.lt.u32.totalorder %v135, %v139
    %vm155 = vcmp.lt.u32.totalorder %v136, %v139
    %156 = vset.pattern.permute.xlu0 1
    %157 = vperm.xlu0 %156, %v52
    %v158 = vpop.permute.xlu0 %157
    %v159 = vsub.s32 %v57, %v158
    %v160 = vsub.s32 %v61, %v158
    %v161 = vsub.s32 %v65, %v158
    %v162 = vsub.s32 %v69, %v158
    %v163 = vsub.s32 %v73, %v158
    %v164 = vsub.s32 %v77, %v158
    %v165 = vsub.s32 %v81, %v158
    %v166 = vsub.s32 %v85, %v158
    %v167 = vsub.s32 %v89, %v158
    %v168 = vsub.s32 %v93, %v158
    %v169 = vsub.s32 %v97, %v158
    %v170 = vsub.s32 %v101, %v158
    %v171 = vsub.s32 %v105, %v158
    %v172 = vsub.s32 %v109, %v158
    %v173 = vsub.s32 %v113, %v158
    %v174 = vsub.s32 %v117, %v158
    %175 = vset.pattern.permute.xlu0 1
    %176 = vperm.xlu0 %175, %v53
    %v177 = vpop.permute.xlu0 %176
    %vm178 = vcmp.lt.u32.totalorder %v159, %v177
    %vm179 = vcmp.lt.u32.totalorder %v160, %v177
    %vm180 = vcmp.lt.u32.totalorder %v161, %v177
    %vm181 = vcmp.lt.u32.totalorder %v162, %v177
    %vm182 = vcmp.lt.u32.totalorder %v163, %v177
    %vm183 = vcmp.lt.u32.totalorder %v164, %v177
    %vm184 = vcmp.lt.u32.totalorder %v165, %v177
    %vm185 = vcmp.lt.u32.totalorder %v166, %v177
    %vm186 = vcmp.lt.u32.totalorder %v167, %v177
    %vm187 = vcmp.lt.u32.totalorder %v168, %v177
    %vm188 = vcmp.lt.u32.totalorder %v169, %v177
    %vm189 = vcmp.lt.u32.totalorder %v170, %v177
    %vm190 = vcmp.lt.u32.totalorder %v171, %v177
    %vm191 = vcmp.lt.u32.totalorder %v172, %v177
    %vm192 = vcmp.lt.u32.totalorder %v173, %v177
    %vm193 = vcmp.lt.u32.totalorder %v174, %v177
    %vm194 = vmor %vm140, %vm178
    %vm195 = vmor %vm141, %vm179
    %vm196 = vmor %vm142, %vm180
    %vm197 = vmor %vm143, %vm181
    %vm198 = vmor %vm144, %vm182
    %vm199 = vmor %vm145, %vm183
    %vm200 = vmor %vm146, %vm184
    %vm201 = vmor %vm147, %vm185
    %vm202 = vmor %vm148, %vm186
    %vm203 = vmor %vm149, %vm187
    %vm204 = vmor %vm150, %vm188
    %vm205 = vmor %vm151, %vm189
    %vm206 = vmor %vm152, %vm190
    %vm207 = vmor %vm153, %vm191
    %vm208 = vmor %vm154, %vm192
    %vm209 = vmor %vm155, %vm193
    %s210 = sld [smem:[#allocation2]]
    %v211 = vld [vmem:[#allocation6] sm:$0xff]
    %v212 = vld [vmem:[#allocation6 + $0x8] sm:$0xff]
    %v213 = vld [vmem:[#allocation6 + $0x10] sm:$0xff]
    %v214 = vld [vmem:[#allocation6 + $0x18] sm:$0xff]
    %v215 = vstv %s210
    %v220 = vcombine.high %v211, %v211
    %v222 = vunpack.c.l.s4 1983009808
    %v223 = vunpack.c.0.s8 %v222
    %v224 = vlaneseq
    %v225 = vshrl.u32 %v224, 7
    %v226 = vsub.s32 %v223, %v225
    %v227 = vrot.slane %v211, %v226
    %v229 = vunpack.c.l.s4 1983009808
    %v230 = vunpack.c.0.s8 %v229
    %v231 = vlaneseq
    %v232 = vshrl.u32 %v231, 7
    %v233 = vsub.s32 %v230, %v232
    %v234 = vrot.slane %v220, %v233
    %v235 = vcombine.high %v227, %v227
    %v236 = vcombine.high %v234, %v234
    %v237 = vcombine.high %v212, %v212
    %v239 = vunpack.c.l.s4 1983009808
    %v240 = vunpack.c.0.s8 %v239
    %v241 = vlaneseq
    %v242 = vshrl.u32 %v241, 7
    %v243 = vsub.s32 %v240, %v242
    %v244 = vrot.slane %v212, %v243
    %v246 = vunpack.c.l.s4 1983009808
    %v247 = vunpack.c.0.s8 %v246
    %v248 = vlaneseq
    %v249 = vshrl.u32 %v248, 7
    %v250 = vsub.s32 %v247, %v249
    %v251 = vrot.slane %v237, %v250
    %v252 = vcombine.high %v244, %v244
    %v253 = vcombine.high %v251, %v251
    %v254 = vcombine.high %v213, %v213
    %v256 = vunpack.c.l.s4 1983009808
    %v257 = vunpack.c.0.s8 %v256
    %v258 = vlaneseq
    %v259 = vshrl.u32 %v258, 7
    %v260 = vsub.s32 %v257, %v259
    %v261 = vrot.slane %v213, %v260
    %v263 = vunpack.c.l.s4 1983009808
    %v264 = vunpack.c.0.s8 %v263
    %v265 = vlaneseq
    %v266 = vshrl.u32 %v265, 7
    %v267 = vsub.s32 %v264, %v266
    %v268 = vrot.slane %v254, %v267
    %v269 = vcombine.high %v261, %v261
    %v270 = vcombine.high %v268, %v268
    %v271 = vcombine.high %v214, %v214
    %v273 = vunpack.c.l.s4 1983009808
    %v274 = vunpack.c.0.s8 %v273
    %v275 = vlaneseq
    %v276 = vshrl.u32 %v275, 7
    %v277 = vsub.s32 %v274, %v276
    %v278 = vrot.slane %v214, %v277
    %v280 = vunpack.c.l.s4 1983009808
    %v281 = vunpack.c.0.s8 %v280
    %v282 = vlaneseq
    %v283 = vshrl.u32 %v282, 7
    %v284 = vsub.s32 %v281, %v283
    %v285 = vrot.slane %v271, %v284
    %v286 = vcombine.high %v278, %v278
    %v287 = vcombine.high %v285, %v285
    %v304 = vsel %vm194, %v215, %v227
    %v305 = vsel %vm195, %v215, %v235
    %v306 = vsel %vm196, %v215, %v234
    %v307 = vsel %vm197, %v215, %v236
    %v308 = vsel %vm198, %v215, %v244
    %v309 = vsel %vm199, %v215, %v252
    %v310 = vsel %vm200, %v215, %v251
    %v311 = vsel %vm201, %v215, %v253
    %v312 = vsel %vm202, %v215, %v261
    %v313 = vsel %vm203, %v215, %v269
    %v314 = vsel %vm204, %v215, %v268
    %v315 = vsel %vm205, %v215, %v270
    %v316 = vsel %vm206, %v215, %v278
    %v317 = vsel %vm207, %v215, %v286
    %v318 = vsel %vm208, %v215, %v285
    %v319 = vsel %vm209, %v215, %v287
    %v336 = vcombine.low %v304, %v305
    %v337 = vcombine.low %v306, %v307
    %v339 = vunpack.c.l.s4 1983009808
    %v340 = vunpack.c.0.s8 %v339
    %v341 = vlaneseq
    %v342 = vshrl.u32 %v341, 7
    %v343 = vsub.s32 %v340, %v342
    %v344 = vrot.slane %v336, %v343
    %v346 = vunpack.c.l.s4 1983009808
    %v347 = vunpack.c.0.s8 %v346
    %v348 = vlaneseq
    %v349 = vshrl.u32 %v348, 7
    %v350 = vsub.s32 %v347, %v349
    %v351 = vrot.slane %v337, %v350
    %v352 = vcombine.low %v344, %v351
    %v353 = vcombine.low %v308, %v309
    %v354 = vcombine.low %v310, %v311
    %v356 = vunpack.c.l.s4 1983009808
    %v357 = vunpack.c.0.s8 %v356
    %v358 = vlaneseq
    %v359 = vshrl.u32 %v358, 7
    %v360 = vsub.s32 %v357, %v359
    %v361 = vrot.slane %v353, %v360
    %v363 = vunpack.c.l.s4 1983009808
    %v364 = vunpack.c.0.s8 %v363
    %v365 = vlaneseq
    %v366 = vshrl.u32 %v365, 7
    %v367 = vsub.s32 %v364, %v366
    %v368 = vrot.slane %v354, %v367
    %v369 = vcombine.low %v361, %v368
    %v370 = vcombine.low %v312, %v313
    %v371 = vcombine.low %v314, %v315
    %v373 = vunpack.c.l.s4 1983009808
    %v374 = vunpack.c.0.s8 %v373
    %v375 = vlaneseq
    %v376 = vshrl.u32 %v375, 7
    %v377 = vsub.s32 %v374, %v376
    %v378 = vrot.slane %v370, %v377
    %v380 = vunpack.c.l.s4 1983009808
    %v381 = vunpack.c.0.s8 %v380
    %v382 = vlaneseq
    %v383 = vshrl.u32 %v382, 7
    %v384 = vsub.s32 %v381, %v383
    %v385 = vrot.slane %v371, %v384
    %v386 = vcombine.low %v378, %v385
    %v387 = vcombine.low %v316, %v317
    %v388 = vcombine.low %v318, %v319
    %v390 = vunpack.c.l.s4 1983009808
    %v391 = vunpack.c.0.s8 %v390
    %v392 = vlaneseq
    %v393 = vshrl.u32 %v392, 7
    %v394 = vsub.s32 %v391, %v393
    %v395 = vrot.slane %v387, %v394
    %v397 = vunpack.c.l.s4 1983009808
    %v398 = vunpack.c.0.s8 %v397
    %v399 = vlaneseq
    %v400 = vshrl.u32 %v399, 7
    %v401 = vsub.s32 %v398, %v400
    %v402 = vrot.slane %v388, %v401
    %v403 = vcombine.low %v395, %v402
    %408 = vst [vmem:[#allocation8] sm:$0xff] %v352
    %409 = vst [vmem:[#allocation8 + $0x8] sm:$0xff] %v369
    %410 = vst [vmem:[#allocation8 + $0x10] sm:$0xff] %v386
    %411 = vst [vmem:[#allocation8 + $0x18] sm:$0xff] %v403
    // Predicated region
    $region30: #{tpu_custom_call.1} parent=1 // pred_check
      _
    $region31: #{tpu_custom_call.1} parent=1 // pred_check_branch
      %413 = sbr.rel (0) target = $region33
    $region32: #{tpu_custom_call.1} parent=1 // pred_region
      %s415 = ssub.s32 512, 512
      %416 = vsyncadd [#allocation5], %s415
      %s418 = sshll.u32 [#allocation8], 4
      %s419 = int_to_ptr.vmem [resolvable:$true] %s418
      %421 = dma.vmem_to_hbm [thread:$0]  %s419, 512, %s5, [#allocation5]
    $region33: #{tpu_custom_call.1} parent=1 // pred_fallthru
      _
    // Predicated region
    $region34: #{tpu_custom_call.1} parent=1 // pred_check
      _
    $region35: #{tpu_custom_call.1} parent=1 // pred_check_branch
      %423 = sbr.rel (0) target = $region37
    $region36: #{tpu_custom_call.1} parent=1 // pred_region
      %424 = dma.done [#allocation5], 512
    $region37: #{tpu_custom_call.1} parent=1 // pred_fallthru
      _
    %425 = vsyncpa [#allocation4], 1
    %426 = vsyncpa [#allocation7], 1
    %427 = vsyncpa [#allocation5], 1

</llo_original>
